<compile_context>
chip_gen: v7x
topology: tpu7x:2x2x1
jax: 0.10.0
libtpu: 0.0.40
codegen_flags: <defaults>
</compile_context>

<pallas_src>
import functools

import jax
import jax.numpy as jnp
from jax.experimental import pallas as pl
from jax.experimental.pallas import tpu as pltpu


SOFTPLUS_BETA = 500.0
SOFTPLUS_INV_BETA = 1.0 / SOFTPLUS_BETA
SOFTPLUS_THRESHOLD = 20.0          # PyTorch nn.Softplus default threshold
DEFAULT_TILE_COLS = 4096           # lane (time) tile; ~1-2 MiB VMEM footprint
LANE = 128


def _round_up(v, mult):
    return ((v + mult - 1) // mult) * mult


def _softplus_beta(x):
    # PyTorch: softplus(x) = (1/beta) * log(1 + exp(beta*x)); returns x when beta*x > thr.
    z = x * SOFTPLUS_BETA
    soft = jnp.log1p(jnp.exp(jnp.minimum(z, SOFTPLUS_THRESHOLD))) * SOFTPLUS_INV_BETA
    return jnp.where(z > SOFTPLUS_THRESHOLD, x, soft)


def _diffusion_kernel(x_ref, w1_ref, b1_ref, w2_ref, b2_ref, o_ref, feat_ref,
                      *, p, m, d_in, d_pad, tile, deltat):
    """One lane-tile (TR output columns) of the diffusion MLP, transposed layout.

    x_ref:  (m+1, TR+OV)  rows 0..m-1 = x^T window, row m = time (already shifted by p)
    w1_ref: (Hp, Dp)      fc1 weight, PyTorch (out, in) layout, zero-padded
    b1_ref: (Hp, 1)       fc1 bias column, zero-padded
    w2_ref: (Hp, 1)       fc2 weight column, zero-padded
    b2_ref: (1, 1) SMEM   fc2 bias scalar
    o_ref:  (1, TR)       lane-dense output row (already scaled by deltat)
    feat_ref: (Dp, TR)    VMEM scratch holding the transposed lag-stacked features
    """
    # Zero the few pad rows every step (<= 7 sublane rows): the zero-padded weight
    # columns already nullify them, but uninitialized VMEM could hold NaN/Inf and
    # 0*NaN = NaN.  Unconditional (not program_id==0-gated) so it stays correct when
    # the parallel grid axis is split across TensorCores (each core owns its scratch).
    if d_pad > d_in:
        feat_ref[d_in:, :] = jnp.zeros((d_pad - d_in, tile), jnp.float32)

    # In-VMEM lag stack: feat[l*m + j, c] = x[c + l, j]  (lane-offset reads, slice stores).
    for l in range(p + 1):
        feat_ref[l * m:(l + 1) * m, :] = x_ref[0:m, l:l + tile]
    # Time row (t[p + r], row-aligned with output column r) at feature index m*(p+1).
    feat_ref[d_in - 1:d_in, :] = x_ref[m:m + 1, 0:tile]

    # fc1 on the MXU: hT = W1 (out, in) @ featT (in, TR) -> (Hp, TR).
    h = jnp.dot(w1_ref[...], feat_ref[...], preferred_element_type=jnp.float32)
    h = _softplus_beta(h + b1_ref[...])

    # fc2 (single output unit): VPU multiply + sublane reduction -> lane-dense row.
    y = jnp.sum(h * w2_ref[...], axis=0, keepdims=True) + b2_ref[0, 0]
    y = _softplus_beta(y)

    # deltat folded in as a compile-time constant; (1, TR) store is dense & unmasked.
    o_ref[...] = y * deltat


def diffusion_pallas(x, t, w1, b1, w2, b2, p, deltat=1.0, tile_cols=DEFAULT_TILE_COLS):
    """Lane-tiled, pipelined forward: lag stack + fc1 + softplus + fc2 + softplus + deltat.

    Weights are in PyTorch layout: w1 (H, D), b1 (H,), w2 (1, H), b2 (1,).
    """
    x = x.astype(jnp.float32)
    t = t.astype(jnp.float32)
    N, m = x.shape
    R = N - p
    d_in = m * (p + 1) + 1
    d_hidden = w1.shape[0]
    d_pad = _round_up(d_in, 8)
    h_pad = _round_up(d_hidden, 8)

    # Lane (time) tile: multiple of 128.
    TR = max(LANE, min(_round_up(tile_cols, LANE), _round_up(R, LANE)))
    # v7x megacore: ensure the "parallel" grid axis has >= 2 steps whenever possible.
    if _round_up(R, LANE) >= 2 * LANE:
        TR = min(TR, _round_up(-(-R // 2), LANE))
    num_tiles = pl.cdiv(R, TR)
    R_pad = num_tiles * TR
    OV = _round_up(p, LANE) if p > 0 else 0      # per-tile lag-overlap columns

    # Augmented, transposed series: rows 0..m-1 = x^T, row m = time (t[p:]),
    # zero-padded on the time axis so every tile window (and lag read) is in range.
    A = jnp.zeros((m + 1, R_pad + OV), jnp.float32)
    A = A.at[:m, :N].set(x.T)
    A = A.at[m, :R].set(t[p:])

    # Overlapping per-tile windows (duplicates only OV columns per tile): one input
    # stream, one DMA descriptor per grid step, no separate tail/time streams.
    cols = jnp.arange(num_tiles)[:, None] * TR + jnp.arange(TR + OV)[None, :]
    x_tiles = jnp.transpose(A[:, cols], (1, 0, 2))          # (num_tiles, m+1, TR+OV)

    # Resident, zero-padded weights (PyTorch (out, in) layout kept for the transposed matmul).
    w1p = jnp.zeros((h_pad, d_pad), jnp.float32).at[:d_hidden, :d_in].set(w1)
    b1p = jnp.zeros((h_pad, 1), jnp.float32).at[:d_hidden, 0].set(b1.reshape(-1))
    w2p = jnp.zeros((h_pad, 1), jnp.float32).at[:d_hidden, 0].set(w2.reshape(-1))
    b2p = jnp.asarray(b2, jnp.float32).reshape(1, 1)

    kernel = functools.partial(
        _diffusion_kernel,
        p=p, m=m, d_in=d_in, d_pad=d_pad, tile=TR, deltat=float(deltat))

    # Advisory cost estimate so XLA schedules surrounding ops around the call.
    flops = 2 * R_pad * d_pad * h_pad + 3 * R_pad * h_pad
    transcendentals = 2 * R_pad * (h_pad + 1)
    bytes_accessed = 4 * (num_tiles * (m + 1) * (TR + OV) + R_pad
                          + h_pad * (d_pad + 2) + 1)

    out = pl.pallas_call(
        kernel,
        out_shape=jax.ShapeDtypeStruct((1, R_pad), jnp.float32),
        grid=(num_tiles,),
        in_specs=[
            # One overlapping window of the augmented transposed series per tile.
            pl.BlockSpec((None, m + 1, TR + OV), lambda i: (i, 0, 0)),
            # Resident weights/biases (constant block index -> fetched once).
            # (pipeline_mode=pl.Buffered(1) would drop their second copy (~tens of KiB);
            #  omitted for portability across jax versions.)
            pl.BlockSpec((h_pad, d_pad), lambda i: (0, 0)),
            pl.BlockSpec((h_pad, 1), lambda i: (0, 0)),
            pl.BlockSpec((h_pad, 1), lambda i: (0, 0)),
            pl.BlockSpec(memory_space=pltpu.MemorySpace.SMEM),   # fc2 bias scalar
        ],
        out_specs=pl.BlockSpec((1, TR), lambda i: (0, i)),       # lane-dense output row
        scratch_shapes=[pltpu.VMEM((d_pad, TR), jnp.float32)],   # lag-stacked features
        compiler_params=pltpu.CompilerParams(
            dimension_semantics=("parallel",),   # megacore-shard lane tiles on v7x
            # Real per-tile footprint is ~1-2 MiB at TR=4096 — comfortably inside the
            # default scoped budget and the 64 MiB v7x physical ceiling.
            vmem_limit_bytes=32 * 1024 * 1024,
        ),
        cost_estimate=pl.CostEstimate(
            flops=flops, transcendentals=transcendentals, bytes_accessed=bytes_accessed),
    )(x_tiles, w1p, b1p, w2p, b2p)

    return out[0, :R, None]                                      # (R, 1)


def init_params(key, m, p):
    """Deterministic synthetic init matching the PyTorch module's shapes/layout."""
    d_in = m * (p + 1) + 1
    d_hidden = int(2 * d_in)
    k1, k2, k3, k4 = jax.random.split(key, 4)
    bound1 = 1.0 / float(jnp.sqrt(d_in))
    bound2 = 1.0 / float(jnp.sqrt(d_hidden))
    # PyTorch Linear layout: weight (out, in), bias (out,).
    w1 = jax.random.uniform(k1, (d_hidden, d_in), jnp.float32, -bound1, bound1)
    b1 = jax.random.uniform(k2, (d_hidden,), jnp.float32, -bound1, bound1)
    w2 = jax.random.uniform(k3, (1, d_hidden), jnp.float32, -bound2, bound2)
    b2 = jax.random.uniform(k4, (1,), jnp.float32, -bound2, bound2)
    return w1, b1, w2, b2


def sdenet_diffusion_forward(x, t, params, p, deltat=1.0, tile_cols=DEFAULT_TILE_COLS):
    """Full SDENet_diffusion.forward — lag stack, MLP, softplus(500) and deltat in-kernel."""
    w1, b1, w2, b2 = params
    return diffusion_pallas(x, t, w1, b1, w2, b2, p, deltat=deltat, tile_cols=tile_cols)


def reference_forward(x, t, params, p, deltat=1.0):
    """Pure-JAX reference (same math, no Pallas) for a sanity check."""
    w1, b1, w2, b2 = params
    N = x.shape[0]
    time = t[p:]
    lag_cols = [x[i:N - p + i] for i in range(0, p + 1)]
    out_lags = jnp.concatenate(lag_cols + [time[:, None]], axis=1).astype(jnp.float32)
    h = _softplus_beta(out_lags @ w1.T + b1)
    y = _softplus_beta(h @ w2.T + b2)
    return y * deltat


if __name__ == "__main__":
    key = jax.random.PRNGKey(0)

    # Case 1: tiny, single tile.  m = 4 features, p = 2 lags, N = 18 -> R = 16 rows,
    #   D = m*(p+1)+1 = 13 input features, hidden = 26, output dim 1.
    m, p, N = 4, 2, 18
    kx, kt, kp, key = jax.random.split(key, 4)
    x = jax.random.normal(kx, (N, m), dtype=jnp.float32)
    t = jnp.linspace(0.0, 1.0, N, dtype=jnp.float32) + 0.01 * jax.random.normal(
        kt, (N,), dtype=jnp.float32)
    params = init_params(kp, m, p)

    out = sdenet_diffusion_forward(x, t, params, p, deltat=1.0)
    out = jax.block_until_ready(out)
    ref = reference_forward(x, t, params, p, deltat=1.0)
    assert out.shape == (N - p, 1), out.shape
    assert jnp.allclose(out, ref, atol=1e-5, rtol=1e-4), (out, ref)

    # Case 2: multiple lane tiles (exercises the cross-tile lag overlap & parallel grid).
    m2, p2, N2 = 3, 3, 300
    kx2, kt2, kp2, key = jax.random.split(key, 4)
    x2 = jax.random.normal(kx2, (N2, m2), dtype=jnp.float32)
    t2 = jnp.linspace(0.0, 1.0, N2, dtype=jnp.float32)
    params2 = init_params(kp2, m2, p2)

    out2 = sdenet_diffusion_forward(x2, t2, params2, p2, deltat=1.0, tile_cols=128)
    out2 = jax.block_until_ready(out2)
    ref2 = reference_forward(x2, t2, params2, p2, deltat=1.0)
    assert out2.shape == (N2 - p2, 1), out2.shape
    assert jnp.allclose(out2, ref2, atol=1e-5, rtol=1e-4), (out2, ref2)

    print("KERNEL_OK")
</pallas_src>

<mosaic_0001>
module attributes {stable_mosaic.version = 11 : i64} {
  func.func @_diffusion_kernel(%arg0: i32, %arg1: memref<1x5x256xf32, #tpu.memory_space<vmem>>, %arg2: memref<32x16xf32, #tpu.memory_space<vmem>>, %arg3: memref<32x1xf32, #tpu.memory_space<vmem>>, %arg4: memref<32x1xf32, #tpu.memory_space<vmem>>, %arg5: memref<1x1xf32, #tpu.memory_space<smem>>, %arg6: memref<1x128xf32, #tpu.memory_space<vmem>>, %arg7: memref<16x128xf32, #tpu.memory_space<vmem>>) attributes {dimension_semantics = [#tpu.dimension_semantics<parallel>], iteration_bounds = array<i64: 1>, scalar_prefetch = 0 : i64, scratch_operands = 1 : i64, tpu.core_type = #tpu.core_type<tc>, window_params = [{transform_indices = @transform_0, window_bounds = array<i64: 1, 5, 256>}, {pipeline_mode = #tpu.pipeline_mode<synchronous>, transform_indices = @transform_1, window_bounds = array<i64: 32, 16>}, {pipeline_mode = #tpu.pipeline_mode<synchronous>, transform_indices = @transform_2, window_bounds = array<i64: 32, 1>}, {pipeline_mode = #tpu.pipeline_mode<synchronous>, transform_indices = @transform_3, window_bounds = array<i64: 32, 1>}, {transform_indices = @transform_4, window_bounds = array<i64: 1, 1>}, {transform_indices = @transform_5, window_bounds = array<i64: 1, 128>}]} {
    %cst = arith.constant 0.000000e+00 : f32
    %0 = vector.broadcast %cst : f32 to vector<3x128xf32>
    %c13 = arith.constant 13 : index
    %c0 = arith.constant 0 : index
    %1 = vector.load %arg7[%c13, %c0] : memref<16x128xf32, #tpu.memory_space<vmem>>, vector<3x128xf32>
    tpu.vector_store %arg7[%c13, %c0], %0 {strides = array<i32>} : memref<16x128xf32, #tpu.memory_space<vmem>>, vector<3x128xf32>,
    %c0_0 = arith.constant 0 : index
    %c0_1 = arith.constant 0 : index
    %c0_2 = arith.constant 0 : index
    %2 = vector.load %arg1[%c0_0, %c0_1, %c0_2] : memref<1x5x256xf32, #tpu.memory_space<vmem>>, vector<1x4x128xf32>
    %3 = vector.shape_cast %2 : vector<1x4x128xf32> to vector<4x128xf32>
    %c0_3 = arith.constant 0 : index
    %c0_4 = arith.constant 0 : index
    %4 = vector.load %arg7[%c0_3, %c0_4] : memref<16x128xf32, #tpu.memory_space<vmem>>, vector<4x128xf32>
    tpu.vector_store %arg7[%c0_3, %c0_4], %3 {strides = array<i32>} : memref<16x128xf32, #tpu.memory_space<vmem>>, vector<4x128xf32>,
    %c0_5 = arith.constant 0 : index
    %c0_6 = arith.constant 0 : index
    %c1 = arith.constant 1 : index
    %5 = vector.load %arg1[%c0_5, %c0_6, %c1] : memref<1x5x256xf32, #tpu.memory_space<vmem>>, vector<1x4x128xf32>
    %6 = vector.shape_cast %5 : vector<1x4x128xf32> to vector<4x128xf32>
    %c4 = arith.constant 4 : index
    %c0_7 = arith.constant 0 : index
    %7 = vector.load %arg7[%c4, %c0_7] : memref<16x128xf32, #tpu.memory_space<vmem>>, vector<4x128xf32>
    tpu.vector_store %arg7[%c4, %c0_7], %6 {strides = array<i32>} : memref<16x128xf32, #tpu.memory_space<vmem>>, vector<4x128xf32>,
    %c0_8 = arith.constant 0 : index
    %c0_9 = arith.constant 0 : index
    %c2 = arith.constant 2 : index
    %8 = vector.load %arg1[%c0_8, %c0_9, %c2] : memref<1x5x256xf32, #tpu.memory_space<vmem>>, vector<1x4x128xf32>
    %9 = vector.shape_cast %8 : vector<1x4x128xf32> to vector<4x128xf32>
    %c8 = arith.constant 8 : index
    %c0_10 = arith.constant 0 : index
    %10 = vector.load %arg7[%c8, %c0_10] : memref<16x128xf32, #tpu.memory_space<vmem>>, vector<4x128xf32>
    tpu.vector_store %arg7[%c8, %c0_10], %9 {strides = array<i32>} : memref<16x128xf32, #tpu.memory_space<vmem>>, vector<4x128xf32>,
    %c0_11 = arith.constant 0 : index
    %c4_12 = arith.constant 4 : index
    %c0_13 = arith.constant 0 : index
    %11 = vector.load %arg1[%c0_11, %c4_12, %c0_13] : memref<1x5x256xf32, #tpu.memory_space<vmem>>, vector<1x1x128xf32>
    %12 = vector.shape_cast %11 : vector<1x1x128xf32> to vector<1x128xf32>
    %c12 = arith.constant 12 : index
    %c0_14 = arith.constant 0 : index
    %13 = vector.load %arg7[%c12, %c0_14] : memref<16x128xf32, #tpu.memory_space<vmem>>, vector<1x128xf32>
    tpu.vector_store %arg7[%c12, %c0_14], %12 {strides = array<i32>} : memref<16x128xf32, #tpu.memory_space<vmem>>, vector<1x128xf32>,
    %c0_15 = arith.constant 0 : index
    %c0_16 = arith.constant 0 : index
    %14 = vector.load %arg2[%c0_15, %c0_16] : memref<32x16xf32, #tpu.memory_space<vmem>>, vector<32x16xf32>
    %c0_17 = arith.constant 0 : index
    %c0_18 = arith.constant 0 : index
    %15 = vector.load %arg7[%c0_17, %c0_18] : memref<16x128xf32, #tpu.memory_space<vmem>>, vector<16x128xf32>
    %cst_19 = arith.constant dense<0.000000e+00> : vector<32x128xf32>
    %16 = tpu.matmul %14, %15, %cst_19 {dimension_numbers = #tpu.dot_dimension_numbers<[1], [0], [0], [1], [0, 0, 1, 1], [], []>} : vector<32x16xf32>, vector<16x128xf32>, vector<32x128xf32> -> vector<32x128xf32>
    %c0_20 = arith.constant 0 : index
    %c0_21 = arith.constant 0 : index
    %17 = vector.load %arg3[%c0_20, %c0_21] : memref<32x1xf32, #tpu.memory_space<vmem>>, vector<32x1xf32>
    %18 = vector.broadcast %17 : vector<32x1xf32> to vector<32x128xf32>
    %19 = arith.addf %16, %18 : vector<32x128xf32>
    %cst_22 = arith.constant 5.000000e+02 : f32
    %20 = vector.broadcast %cst_22 : f32 to vector<32x128xf32>
    %21 = arith.mulf %19, %20 : vector<32x128xf32>
    %cst_23 = arith.constant 2.000000e+01 : f32
    %22 = vector.broadcast %cst_23 : f32 to vector<32x128xf32>
    %23 = arith.minimumf %21, %22 : vector<32x128xf32>
    %24 = math.exp %23 : vector<32x128xf32>
    %25 = math.log1p %24 : vector<32x128xf32>
    %cst_24 = arith.constant 2.000000e-03 : f32
    %26 = vector.broadcast %cst_24 : f32 to vector<32x128xf32>
    %27 = arith.mulf %25, %26 : vector<32x128xf32>
    %cst_25 = arith.constant 2.000000e+01 : f32
    %28 = vector.broadcast %cst_25 : f32 to vector<32x128xf32>
    %29 = arith.cmpf ogt, %21, %28 : vector<32x128xf32>
    %30 = arith.select %29, %19, %27 : vector<32x128xi1>, vector<32x128xf32>
    %c0_26 = arith.constant 0 : index
    %c0_27 = arith.constant 0 : index
    %31 = vector.load %arg4[%c0_26, %c0_27] : memref<32x1xf32, #tpu.memory_space<vmem>>, vector<32x1xf32>
    %32 = vector.broadcast %31 : vector<32x1xf32> to vector<32x128xf32>
    %33 = arith.mulf %30, %32 : vector<32x128xf32>
    %cst_28 = arith.constant dense<0.000000e+00> : vector<128xf32>
    %34 = vector.multi_reduction <add>, %33, %cst_28 [0] : vector<32x128xf32> to vector<128xf32>
    %35 = vector.shape_cast %34 : vector<128xf32> to vector<1x128xf32>
    %c0_29 = arith.constant 0 : index
    %c0_30 = arith.constant 0 : index
    %36 = memref.load %arg5[%c0_29, %c0_30] : memref<1x1xf32, #tpu.memory_space<smem>>
    %37 = vector.broadcast %36 : f32 to vector<1x128xf32>
    %38 = arith.addf %35, %37 : vector<1x128xf32>
    %cst_31 = arith.constant 5.000000e+02 : f32
    %39 = vector.broadcast %cst_31 : f32 to vector<1x128xf32>
    %40 = arith.mulf %38, %39 : vector<1x128xf32>
    %cst_32 = arith.constant 2.000000e+01 : f32
    %41 = vector.broadcast %cst_32 : f32 to vector<1x128xf32>
    %42 = arith.minimumf %40, %41 : vector<1x128xf32>
    %43 = math.exp %42 : vector<1x128xf32>
    %44 = math.log1p %43 : vector<1x128xf32>
    %cst_33 = arith.constant 2.000000e-03 : f32
    %45 = vector.broadcast %cst_33 : f32 to vector<1x128xf32>
    %46 = arith.mulf %44, %45 : vector<1x128xf32>
    %cst_34 = arith.constant 2.000000e+01 : f32
    %47 = vector.broadcast %cst_34 : f32 to vector<1x128xf32>
    %48 = arith.cmpf ogt, %40, %47 : vector<1x128xf32>
    %49 = arith.select %48, %38, %46 : vector<1x128xi1>, vector<1x128xf32>
    %cst_35 = arith.constant 1.000000e+00 : f32
    %50 = vector.broadcast %cst_35 : f32 to vector<1x128xf32>
    %51 = arith.mulf %49, %50 : vector<1x128xf32>
    %c0_36 = arith.constant 0 : index
    %c0_37 = arith.constant 0 : index
    %52 = vector.load %arg6[%c0_36, %c0_37] : memref<1x128xf32, #tpu.memory_space<vmem>>, vector<1x128xf32>
    tpu.vector_store %arg6[%c0_36, %c0_37], %51 {strides = array<i32>} : memref<1x128xf32, #tpu.memory_space<vmem>>, vector<1x128xf32>,
    return
  }
  func.func @transform_0(%arg0: i32) -> (i32, i32, i32) {
    %c0_i32 = arith.constant 0 : i32
    %c0_i32_0 = arith.constant 0 : i32
    %c0_i32_1 = arith.constant 0 : i32
    return %arg0, %c0_i32, %c0_i32_0 : i32, i32, i32
  }
  func.func @transform_1(%arg0: i32) -> (i32, i32) {
    %c0_i32 = arith.constant 0 : i32
    %c0_i32_0 = arith.constant 0 : i32
    %c0_i32_1 = arith.constant 0 : i32
    return %c0_i32, %c0_i32_0 : i32, i32
  }
  func.func @transform_2(%arg0: i32) -> (i32, i32) {
    %c0_i32 = arith.constant 0 : i32
    %c0_i32_0 = arith.constant 0 : i32
    %c0_i32_1 = arith.constant 0 : i32
    return %c0_i32, %c0_i32_0 : i32, i32
  }
  func.func @transform_3(%arg0: i32) -> (i32, i32) {
    %c0_i32 = arith.constant 0 : i32
    %c0_i32_0 = arith.constant 0 : i32
    %c0_i32_1 = arith.constant 0 : i32
    return %c0_i32, %c0_i32_0 : i32, i32
  }
  func.func @transform_4(%arg0: i32) -> (i32, i32) {
    %c0_i32 = arith.constant 0 : i32
    %c0_i32_0 = arith.constant 0 : i32
    %c0_i32_1 = arith.constant 0 : i32
    return %c0_i32, %c0_i32_0 : i32, i32
  }
  func.func @transform_5(%arg0: i32) -> (i32, i32) {
    %c0_i32 = arith.constant 0 : i32
    %c0_i32_0 = arith.constant 0 : i32
    return %c0_i32, %arg0 : i32, i32
  }
}

</mosaic_0001>

<llo_original>
// kernel: tpu_custom_call.1
$region0: #{tpu_custom_call.1}
  #allocation0 [shape = 'u32[]', space=smem, size = 0x4, offset = 0x4, fixed_abs, tag = 'smem constant byte address 0x4 - core index']
  #allocation1 [shape = 'u32[144,128]{1,0:T(1,128)}', space=vmem, size = 0x12000, scoped, tag = 'internal scratch']
  #allocation2 [shape = 'f32[16,128]{1,0:T(8,128)}', space=vmem, size = 0x2000, scoped, tag = 'scratch operand']
  #allocation3 [shape = 'f32[1,1]{1,0:T(1,128)S(6)}', space=smem, size = 0x200, scoped, tag = 'scoped memory for tpu_custom_call.1']
  %s0 = inlined_call_operand.vmem [shape: f32[1,5,256], index: 0, kind: input, shape index: {}]
  %s1 = inlined_call_operand.vmem [shape: f32[32,16], index: 1, kind: input, shape index: {}]
  %s2 = inlined_call_operand.vmem [shape: f32[32,1], index: 2, kind: input, shape index: {}]
  %s3 = inlined_call_operand.vmem [shape: f32[32,1], index: 3, kind: input, shape index: {}]
  %s4 = inlined_call_operand.<no memory space> [shape: f32[1,1], index: 4, kind: input, shape index: {}]
  %s5 = inlined_call_operand.hbm [shape: f32[1,128], index: 5, kind: output, shape index: {}]
  %s6 = sld [smem:[#allocation0]]
  $region30: #{tpu_custom_call.1} parent=0
    _
  %s8 = ssub.s32 1, %s6
  %s9 = scalar_select 0, %s8, %s6
  %10 = sst [smem:[#allocation3]] %s4
  $region1: #{tpu_custom_call.1} parent=0
    #allocation4 [shape = 'u8[512]{0}', space=vmem, size = 0x400, scoped, tag = 'output window, operand 0, single buffered']
    #allocation5 [shape = 's32[1]{0}', space=sflag, size = 0x4, scoped, tag = 'scoped memory for tpu_custom_call.1']
    %11 = vsyncpa [#allocation5], 0
    // Predicated region
    $region2: #{tpu_custom_call.1} parent=1 // pred_check
      _
    $region3: #{tpu_custom_call.1} parent=1 // pred_check_branch
      %13 = sbr.rel (0) target = $region5
    $region4: #{tpu_custom_call.1} parent=1 // pred_region
      _
    $region5: #{tpu_custom_call.1} parent=1 // pred_fallthru
      _
    // Predicated region
    $region6: #{tpu_custom_call.1} parent=1 // pred_check
      _
    $region7: #{tpu_custom_call.1} parent=1 // pred_check_branch
      %15 = sbr.rel (0) target = $region9
    $region8: #{tpu_custom_call.1} parent=1 // pred_region
      _
    $region9: #{tpu_custom_call.1} parent=1 // pred_fallthru
      _
    // Predicated region
    $region10: #{tpu_custom_call.1} parent=1 // pred_check
      _
    $region11: #{tpu_custom_call.1} parent=1 // pred_check_branch
      %17 = sbr.rel (0) target = $region13
    $region12: #{tpu_custom_call.1} parent=1 // pred_region
      _
    $region13: #{tpu_custom_call.1} parent=1 // pred_fallthru
      _
    // Predicated region
    $region14: #{tpu_custom_call.1} parent=1 // pred_check
      _
    $region15: #{tpu_custom_call.1} parent=1 // pred_check_branch
      %19 = sbr.rel (0) target = $region17
    $region16: #{tpu_custom_call.1} parent=1 // pred_region
      _
    $region17: #{tpu_custom_call.1} parent=1 // pred_fallthru
      _
    // Predicated region
    $region18: #{tpu_custom_call.1} parent=1 // pred_check
      _
    $region19: #{tpu_custom_call.1} parent=1 // pred_check_branch
      %21 = sbr.rel (0) target = $region21
    $region20: #{tpu_custom_call.1} parent=1 // pred_region
      _
    $region21: #{tpu_custom_call.1} parent=1 // pred_fallthru
      _
    %22 = vst [vmem:[#allocation2 + $0xd] sm:$0x7] 0.0
    %v23 = vld [vmem:[%s0] sm:$0xf]
    %24 = vst [vmem:[#allocation2] sm:$0xf] %v23
    %v25 = vld [vmem:[%s0] sm:$0xf]
    %v26 = vld [vmem:[%s0 + $0x8] sm:$0xf]
    %29 = vrot.lane.b32.xlu0 %v25, 127
    %v30 = vpop.permute.xlu0 %29
    %31 = vrot.lane.b32.xlu0 %v26, 127
    %v32 = vpop.permute.xlu0 %31
    %vm33 = vcmask 1039360
    %v34 = vsel %vm33, %v30, %v32
    %36 = vst [vmem:[#allocation2 + $0x4] sm:$0xf] %v34
    %v37 = vld [vmem:[%s0] sm:$0xf]
    %v38 = vld [vmem:[%s0 + $0x8] sm:$0xf]
    %41 = vrot.lane.b32.xlu0 %v37, 126
    %v42 = vpop.permute.xlu0 %41
    %43 = vrot.lane.b32.xlu0 %v38, 126
    %v44 = vpop.permute.xlu0 %43
    %vm45 = vcmask 1031168
    %v46 = vsel %vm45, %v42, %v44
    %48 = vst [vmem:[#allocation2 + $0x8] sm:$0xf] %v46
    %v49 = vld [vmem:[%s0 + $0x4] ss:$0 sm:$0xff]
    %50 = vst [vmem:[#allocation2 + $0xc] sm:$0x1] %v49
    %v51 = vld [vmem:[%s1] sm:$0xff]
    %v52 = vld [vmem:[%s1 + $0x8] sm:$0xff]
    %v53 = vld [vmem:[%s1 + $0x10] sm:$0xff]
    %v54 = vld [vmem:[%s1 + $0x18] sm:$0xff]
    %v55 = vld [vmem:[#allocation2] sm:$0xff]
    %v56 = vld [vmem:[#allocation2 + $0x8] sm:$0xff]
    %v57 = vld [vmem:[%s2] sm:$0xff]
    %v58 = vld [vmem:[%s2 + $0x8] sm:$0xff]
    %v59 = vld [vmem:[%s2 + $0x10] sm:$0xff]
    %v60 = vld [vmem:[%s2 + $0x18] sm:$0xff]
    %62 = vset.pattern.permute.xlu0 0
    %63 = vperm.xlu0 %62, %v57
    %v64 = vpop.permute.xlu0 %63
    %67 = vset.pattern.permute.xlu0 0
    %68 = vperm.xlu0 %67, %v58
    %v69 = vpop.permute.xlu0 %68
    %72 = vset.pattern.permute.xlu0 0
    %73 = vperm.xlu0 %72, %v59
    %v74 = vpop.permute.xlu0 %73
    %77 = vset.pattern.permute.xlu0 0
    %78 = vperm.xlu0 %77, %v60
    %v79 = vpop.permute.xlu0 %78
    %vm81 = vcmask 130048
    %v83 = vsel %vm81, %v51, 0
    %v86 = vsel %vm81, %v52, 0
    %v89 = vsel %vm81, %v53, 0
    %v92 = vsel %vm81, %v54, 0
    %94 = vmatprep.subr.mxu0 0.0
    %95 = vmatpush1.msra.mxu0 %v55
    %96 = vmatprep.subr.mxu0 0.0
    %97 = vmatpush1.msra.mxu0 %v56
    %98 = vmatprep.subr.mxu0 0.0
    %99 = vmatpush1.msra.mxu0 0.0
    %100 = vmatprep.subr.mxu0 0.0
    %101 = vmatpush1.msra.mxu0 0.0
    %102 = vmatprep.subr.mxu0 0.0
    %103 = vmatpush1.msra.mxu0 0.0
    %104 = vmatprep.subr.mxu0 0.0
    %105 = vmatpush1.msra.mxu0 0.0
    %106 = vmatprep.subr.mxu0 0.0
    %107 = vmatpush1.msra.mxu0 0.0
    %108 = vmatprep.subr.mxu0 0.0
    %109 = vmatpush1.msra.mxu0 0.0
    %110 = vmatprep.subr.mxu0 0.0
    %111 = vmatpush1.msra.mxu0 0.0
    %112 = vmatprep.subr.mxu0 0.0
    %113 = vmatpush1.msra.mxu0 0.0
    %114 = vmatprep.subr.mxu0 0.0
    %115 = vmatpush1.msra.mxu0 0.0
    %116 = vmatprep.subr.mxu0 0.0
    %117 = vmatpush1.msra.mxu0 0.0
    %118 = vmatprep.subr.mxu0 0.0
    %119 = vmatpush1.msra.mxu0 0.0
    %120 = vmatprep.subr.mxu0 0.0
    %121 = vmatpush1.msra.mxu0 0.0
    %122 = vmatprep.subr.mxu0 0.0
    %123 = vmatpush1.msra.mxu0 0.0
    %124 = vmatprep.subr.mxu0 0.0
    %125 = vmatpush1.msra.mxu0 0.0
    %126 = vmatprep.subr.mxu0 0.0
    %127 = vmatpush1.msra.mxu0 0.0
    %128 = vmatprep.subr.mxu0 0.0
    %129 = vmatpush1.msra.mxu0 0.0
    %130 = vmatprep.subr.mxu0 0.0
    %131 = vmatpush1.msra.mxu0 0.0
    %132 = vmatprep.subr.mxu0 0.0
    %133 = vmatpush1.msra.mxu0 0.0
    %134 = vmatprep.subr.mxu0 0.0
    %135 = vmatpush1.msra.mxu0 0.0
    %136 = vmatprep.subr.mxu0 0.0
    %137 = vmatpush1.msra.mxu0 0.0
    %138 = vmatprep.subr.mxu0 0.0
    %139 = vmatpush1.msra.mxu0 0.0
    %140 = vmatprep.subr.mxu0 0.0
    %141 = vmatpush1.msra.mxu0 0.0
    %142 = vmatprep.subr.mxu0 0.0
    %143 = vmatpush1.msra.mxu0 0.0
    %144 = vmatprep.subr.mxu0 0.0
    %145 = vmatpush1.msra.mxu0 0.0
    %146 = vmatprep.subr.mxu0 0.0
    %147 = vmatpush1.msra.mxu0 0.0
    %148 = vmatprep.subr.mxu0 0.0
    %149 = vmatpush1.msra.mxu0 0.0
    %150 = vmatprep.subr.mxu0 0.0
    %151 = vmatpush1.msra.mxu0 0.0
    %152 = vmatprep.subr.mxu0 0.0
    %153 = vmatpush1.msra.mxu0 0.0
    %154 = vmatprep.subr.mxu0 0.0
    %155 = vmatpush1.msra.mxu0 0.0
    %156 = vmatprep.subr.mxu0 0.0
    %157 = vmatpush1.msra.mxu0 0.0
    %158 = vmatprep.mubr.f32.mxu0 0.0
    %159 = vmatmul.mubr.f32.gmra.mrb[0].mxu0 %v83
    %v160 = vpop.f32.mrb[0].mxu0
    %v161 = vadd.f32 %v64, %v160
    %v162 = vpop.f32.mrb[0].mxu0
    %163 = vmatprep.mubr.f32.mxu0 0.0
    %164 = vmatmul.mubr.f32.gmra.mrb[0].mxu0 %v86
    %v165 = vpop.f32.mrb[0].mxu0
    %v166 = vadd.f32 %v69, %v165
    %v167 = vpop.f32.mrb[0].mxu0
    %168 = vmatprep.mubr.f32.mxu0 0.0
    %169 = vmatmul.mubr.f32.gmra.mrb[0].mxu0 %v89
    %v170 = vpop.f32.mrb[0].mxu0
    %v171 = vadd.f32 %v74, %v170
    %v172 = vpop.f32.mrb[0].mxu0
    %173 = vmatprep.mubr.f32.mxu0 0.0
    %174 = vmatmul.mubr.f32.gmra.mrb[0].mxu0 %v92
    %v175 = vpop.f32.mrb[0].mxu0
    %v176 = vadd.f32 %v79, %v175
    %v177 = vpop.f32.mrb[0].mxu0
    %178 = vdwg.mxu0
    %v179 = vmul.f32 %v161, 500.0
    %v180 = vmul.f32 %v166, 500.0
    %v181 = vmul.f32 %v171, 500.0
    %v182 = vmul.f32 %v176, 500.0
    %v183 = vmin.f32 %v179, 20.0
    %v184 = vmin.f32 %v180, 20.0
    %v185 = vmin.f32 %v181, 20.0
    %v186 = vmin.f32 %v182, 20.0
    %v187 = vmul.f32 %v183, 1.442695
    %v188 = vpow.pop %v187
    %v189 = vmul.f32 %v184, 1.442695
    %v190 = vpow.pop %v189
    %v191 = vmul.f32 %v185, 1.442695
    %v192 = vpow.pop %v191
    %v193 = vmul.f32 %v186, 1.442695
    %v194 = vpow.pop %v193
    %v195 = vadd.f32 %v188, 1.0
    %v196 = vlog2.pop %v195
    %v197 = vmul.f32 %v196, 0.6931472
    %v198 = vmul.f32 -0.5, %v188
    %v199 = vadd.f32 %v198, 1.0
    %v200 = vmul.f32 %v199, %v188
    %v201 = vand.u32 2147483647, %v188
    %vm202 = vcmp.lt.f32.partialorder %v201, 0.0004427343
    %v203 = vsel %vm202, %v200, %v197
    %v204 = vadd.f32 %v190, 1.0
    %v205 = vlog2.pop %v204
    %v206 = vmul.f32 %v205, 0.6931472
    %v207 = vmul.f32 -0.5, %v190
    %v208 = vadd.f32 %v207, 1.0
    %v209 = vmul.f32 %v208, %v190
    %v210 = vand.u32 2147483647, %v190
    %vm211 = vcmp.lt.f32.partialorder %v210, 0.0004427343
    %v212 = vsel %vm211, %v209, %v206
    %v213 = vadd.f32 %v192, 1.0
    %v214 = vlog2.pop %v213
    %v215 = vmul.f32 %v214, 0.6931472
    %v216 = vmul.f32 -0.5, %v192
    %v217 = vadd.f32 %v216, 1.0
    %v218 = vmul.f32 %v217, %v192
    %v219 = vand.u32 2147483647, %v192
    %vm220 = vcmp.lt.f32.partialorder %v219, 0.0004427343
    %v221 = vsel %vm220, %v218, %v215
    %v222 = vadd.f32 %v194, 1.0
    %v223 = vlog2.pop %v222
    %v224 = vmul.f32 %v223, 0.6931472
    %v225 = vmul.f32 -0.5, %v194
    %v226 = vadd.f32 %v225, 1.0
    %v227 = vmul.f32 %v226, %v194
    %v228 = vand.u32 2147483647, %v194
    %vm229 = vcmp.lt.f32.partialorder %v228, 0.0004427343
    %v230 = vsel %vm229, %v227, %v224
    %v231 = vmul.f32 %v203, 0.002
    %v232 = vmul.f32 %v212, 0.002
    %v233 = vmul.f32 %v221, 0.002
    %v234 = vmul.f32 %v230, 0.002
    %vm235 = vcmp.gt.f32.partialorder %v179, 20.0
    %vm236 = vcmp.gt.f32.partialorder %v180, 20.0
    %vm237 = vcmp.gt.f32.partialorder %v181, 20.0
    %vm238 = vcmp.gt.f32.partialorder %v182, 20.0
    %v239 = vsel %vm235, %v161, %v231
    %v240 = vsel %vm236, %v166, %v232
    %v241 = vsel %vm237, %v171, %v233
    %v242 = vsel %vm238, %v176, %v234
    %v243 = vld [vmem:[%s3] sm:$0xff]
    %v244 = vld [vmem:[%s3 + $0x8] sm:$0xff]
    %v245 = vld [vmem:[%s3 + $0x10] sm:$0xff]
    %v246 = vld [vmem:[%s3 + $0x18] sm:$0xff]
    %248 = vset.pattern.permute.xlu0 0
    %249 = vperm.xlu0 %248, %v243
    %v250 = vpop.permute.xlu0 %249
    %253 = vset.pattern.permute.xlu0 0
    %254 = vperm.xlu0 %253, %v244
    %v255 = vpop.permute.xlu0 %254
    %258 = vset.pattern.permute.xlu0 0
    %259 = vperm.xlu0 %258, %v245
    %v260 = vpop.permute.xlu0 %259
    %263 = vset.pattern.permute.xlu0 0
    %264 = vperm.xlu0 %263, %v246
    %v265 = vpop.permute.xlu0 %264
    %v267 = vmul.f32 %v239, %v250
    %v268 = vmul.f32 %v240, %v255
    %v269 = vmul.f32 %v241, %v260
    %v270 = vmul.f32 %v242, %v265
    %v271 = vadd.f32 %v267, %v268
    %v272 = vadd.f32 %v271, %v269
    %v273 = vadd.f32 %v272, %v270
    %v274 = vrot.slane %v273, 4
    %v275 = vadd.f32 %v273, %v274
    %v276 = vrot.slane %v275, 2
    %v277 = vadd.f32 %v275, %v276
    %v278 = vrot.slane %v277, 1
    %v279 = vadd.f32 %v277, %v278
    %s280 = sld [smem:[#allocation3]]
    %v281 = vstv %s280
    %v282 = vadd.f32 %v279, %v281
    %v283 = vmul.f32 %v282, 500.0
    %v284 = vmin.f32 %v283, 20.0
    %v285 = vmul.f32 %v284, 1.442695
    %v286 = vpow.pop %v285
    %v287 = vadd.f32 %v286, 1.0
    %v288 = vlog2.pop %v287
    %v289 = vmul.f32 %v288, 0.6931472
    %v290 = vmul.f32 -0.5, %v286
    %v291 = vadd.f32 %v290, 1.0
    %v292 = vmul.f32 %v291, %v286
    %v293 = vand.u32 2147483647, %v286
    %vm294 = vcmp.lt.f32.partialorder %v293, 0.0004427343
    %v295 = vsel %vm294, %v292, %v289
    %v296 = vmul.f32 %v295, 0.002
    %vm297 = vcmp.gt.f32.partialorder %v283, 20.0
    %v298 = vsel %vm297, %v282, %v296
    %299 = vst [vmem:[#allocation4] sm:$0x1] %v298
    // Predicated region
    $region22: #{tpu_custom_call.1} parent=1 // pred_check
      _
    $region23: #{tpu_custom_call.1} parent=1 // pred_check_branch
      %301 = sbr.rel (0) target = $region25
    $region24: #{tpu_custom_call.1} parent=1 // pred_region
      %s303 = ssub.s32 16, 16
      %304 = vsyncadd [#allocation5], %s303
      %s306 = sshll.u32 [#allocation4], 4
      %s307 = int_to_ptr.vmem [resolvable:$true] %s306
      %309 = dma.vmem_to_hbm [thread:$0]  %s307, 16, %s5, [#allocation5]
    $region25: #{tpu_custom_call.1} parent=1 // pred_fallthru
      _
    // Predicated region
    $region26: #{tpu_custom_call.1} parent=1 // pred_check
      _
    $region27: #{tpu_custom_call.1} parent=1 // pred_check_branch
      %311 = sbr.rel (0) target = $region29
    $region28: #{tpu_custom_call.1} parent=1 // pred_region
      %312 = dma.done [#allocation5], 16
    $region29: #{tpu_custom_call.1} parent=1 // pred_fallthru
      _
    %313 = vsyncpa [#allocation5], 1

</llo_original>
